<compile_context>
chip_gen: v6e
topology: v6e:2x2x1
jax: 0.10.0
libtpu: 0.0.40
codegen_flags: <defaults>
</compile_context>

<pallas_src>
import functools
import math

import jax
import jax.numpy as jnp
from jax import lax
from jax.experimental import pallas as pl
from jax.experimental.pallas import tpu as pltpu

LOG_2PI = math.log(2.0 * math.pi)


def _round_up(n, m):
    return ((n + m - 1) // m) * m


def _recip(v):
    # EUP approx reciprocal + two Newton-Raphson refinements on the VPU
    # (keeps the EUP slot cheap; error ~1e-8 relative, well inside 1e-5 rtol).
    r = pl.reciprocal(v, approx=True)
    r = r * (2.0 - v * r)
    r = r * (2.0 - v * r)
    return r


def _nll_tile(p_ref):
    """p_ref block: (12, tile_rows, 128). Returns (tile_rows, 128) per-sample NLL."""
    mu0, mu1, mu2 = p_ref[0], p_ref[1], p_ref[2]
    x0, x1, x2 = p_ref[3], p_ref[4], p_ref[5]
    L00, L10, L11 = p_ref[6], p_ref[7], p_ref[8]
    L20, L21, L22 = p_ref[9], p_ref[10], p_ref[11]

    d0 = x0 - mu0
    d1 = x1 - mu1
    d2 = x2 - mu2

    r00 = _recip(L00)
    r11 = _recip(L11)
    r22 = _recip(L22)

    # Forward substitution y = L^-1 diff; quadratic = ||y||^2 = diff^T (L L^T)^-1 diff.
    y0 = d0 * r00
    y1 = (d1 - L10 * y0) * r11
    y2 = (d2 - L20 * y0 - L21 * y1) * r22
    quad = y0 * y0 + y1 * y1 + y2 * y2

    # Sum of logs (exact reference semantics; no product over/underflow concern).
    log_det = 2.0 * (jnp.log(L00) + jnp.log(L11) + jnp.log(L22))
    return 0.5 * (quad + log_det + 3.0 * LOG_2PI)


def _gnll_reduce_kernel(p_ref, out_ref, *, batch):
    """Per-tile lane partial sums -> out block (1, 8, 128); final sum in wrapper."""
    i = pl.program_id(0)
    last = pl.num_programs(0) - 1
    nll = _nll_tile(p_ref)                                   # (tile_rows, 128)
    tile_rows = nll.shape[0]

    def lane_partials(v):
        s = jnp.sum(v, axis=0, keepdims=True)                # (1, 128)
        rows = lax.broadcasted_iota(jnp.int32, (8, 128), 0)
        return jnp.where(rows == 0, s, 0.0)                  # (8, 128)

    @pl.when(i < last)
    def _():
        # Full tiles carry no padded samples: plain reduce, no mask work.
        out_ref[0] = lane_partials(nll)

    @pl.when(i == last)
    def _():
        # Mask wrapper padding + ragged-final-block garbage only on the last step.
        row = lax.broadcasted_iota(jnp.int32, (tile_rows, 128), 0)
        lane = lax.broadcasted_iota(jnp.int32, (tile_rows, 128), 1)
        sample = (i * tile_rows + row) * 128 + lane
        out_ref[0] = lane_partials(jnp.where(sample < batch, nll, 0.0))


def _gnll_kernel(p_ref, out_ref):
    out_ref[...] = _nll_tile(p_ref)


@functools.partial(jax.jit, static_argnames=("reduce", "tile_samples"))
def gaussian_nll_loss_3d(mu, L, x, reduce=True, tile_samples=65536):
    """mu: (B, 3), L: (B, 3, 3) lower Cholesky, x: (B, 3)."""
    B = int(mu.shape[0])
    f32 = jnp.float32

    B_pad = _round_up(B, 128)            # pad only to the 128-lane boundary
    R = B_pad // 128                     # sample-rows of 128 lanes each

    # ---- wrapper repack: static slices only, one concat + one pad + one
    # transpose, so XLA fuses it into a single copy pass. --------------------
    mu_f = jnp.asarray(mu, f32)                              # (B, 3)
    x_f = jnp.asarray(x, f32)                                # (B, 3)
    L_f = jnp.asarray(L, f32).reshape(B, 9)                  # row-major 3x3
    comps = jnp.concatenate(
        [mu_f, x_f, L_f[:, 0:1], L_f[:, 3:5], L_f[:, 6:9]], axis=1)  # (B, 12)
    if B_pad != B:
        comps = jnp.pad(comps, ((0, B_pad - B), (0, 0)))     # zero pad (masked/sliced later)
    packed = comps.T.reshape(12, R, 128)                     # component-major, (8,128)-dense
    # TODO(synk): if the producer emits this (12, B//128, 128) layout directly,
    # this transpose pass (one extra HBM read+write) disappears entirely.

    # Rows of 128 samples per grid step. 512 rows = 65536 samples -> 3 MiB block
    # (6 MiB double-buffered): safe within v5e's 16 MiB default scoped VMEM;
    # v6e/v7x can pass tile_samples=131072 for fewer, larger steps.
    max_rows = max(8, (int(tile_samples) // 128) // 8 * 8)
    if R <= max_rows:
        tile_rows = R                    # single block, equal to full array dim
        grid = (1,)
    else:
        tile_rows = max_rows             # multiple of 8; last block may be ragged
        grid = (pl.cdiv(R, tile_rows),)

    in_specs = [pl.BlockSpec((12, tile_rows, 128), lambda i: (0, i, 0))]

    if reduce:
        n_tiles = grid[0]
        partials = pl.pallas_call(
            functools.partial(_gnll_reduce_kernel, batch=B),
            out_shape=jax.ShapeDtypeStruct((n_tiles, 8, 128), jnp.float32),
            grid_spec=pltpu.PrefetchScalarGridSpec(
                num_scalar_prefetch=0,
                grid=grid,
                in_specs=in_specs,
                out_specs=pl.BlockSpec((1, 8, 128), lambda i: (i, 0, 0)),
            ),
            compiler_params=pltpu.CompilerParams(
                dimension_semantics=("parallel",)),
        )(packed)
        return jnp.sum(partials) / B
    else:
        out = pl.pallas_call(
            _gnll_kernel,
            out_shape=jax.ShapeDtypeStruct((R, 128), jnp.float32),
            grid_spec=pltpu.PrefetchScalarGridSpec(
                num_scalar_prefetch=0,
                grid=grid,
                in_specs=in_specs,
                out_specs=pl.BlockSpec((tile_rows, 128), lambda i: (i, 0)),
            ),
            compiler_params=pltpu.CompilerParams(
                dimension_semantics=("parallel",)),
        )(packed)
        return out.reshape(B_pad)[:B]


def _reference(mu, L, x, reduce=True):
    diff = (x - mu)[..., None]                                   # (B, 3, 1)
    z = jax.scipy.linalg.cho_solve((L, True), diff)              # (B, 3, 1)
    quadratic = jnp.squeeze(jnp.matmul(jnp.swapaxes(diff, 1, 2), z))
    log_det = 2.0 * jnp.sum(jnp.log(jnp.diagonal(L, axis1=1, axis2=2)), axis=1)
    nll = 0.5 * (quadratic + log_det + 3.0 * LOG_2PI)
    return jnp.mean(nll) if reduce else nll


def _make_inputs(key, B):
    k1, k2, k3 = jax.random.split(key, 3)
    mu = jax.random.normal(k1, (B, 3), dtype=jnp.float32)
    x = jax.random.normal(k2, (B, 3), dtype=jnp.float32)
    A = 0.3 * jax.random.normal(k3, (B, 3, 3), dtype=jnp.float32)
    # Valid lower-Cholesky factor: strictly lower part of A + positive diagonal.
    L = jnp.tril(A, k=-1)
    diag = jnp.abs(jnp.diagonal(A, axis1=1, axis2=2)) + 0.5      # (B, 3)
    L = L + jax.vmap(jnp.diag)(diag)
    return mu, L, x


if __name__ == "__main__":
    # B=200 is deliberately not a multiple of 128: exercises wrapper padding,
    # the single-block path, and the last-step mask.
    mu, L, x = _make_inputs(jax.random.PRNGKey(0), 200)

    out = jax.block_until_ready(gaussian_nll_loss_3d(mu, L, x, reduce=True))
    ref = _reference(mu, L, x, reduce=True)
    assert jnp.allclose(out, ref, rtol=1e-5, atol=1e-5), (out, ref)

    out_nr = jax.block_until_ready(gaussian_nll_loss_3d(mu, L, x, reduce=False))
    ref_nr = _reference(mu, L, x, reduce=False)
    assert jnp.allclose(out_nr, ref_nr, rtol=1e-5, atol=1e-5)

    # Multi-tile grid with a ragged final block (tile_samples=1024 -> 8 rows/step,
    # B=1200 -> 10 rows -> grid of 2 with a partial last block) to exercise the
    # per-tile-partials reduce path and the last-step mask.
    mu2, L2, x2 = _make_inputs(jax.random.PRNGKey(1), 1200)
    out2 = jax.block_until_ready(
        gaussian_nll_loss_3d(mu2, L2, x2, reduce=True, tile_samples=1024))
    ref2 = _reference(mu2, L2, x2, reduce=True)
    assert jnp.allclose(out2, ref2, rtol=1e-5, atol=1e-5), (out2, ref2)

    out2_nr = jax.block_until_ready(
        gaussian_nll_loss_3d(mu2, L2, x2, reduce=False, tile_samples=1024))
    ref2_nr = _reference(mu2, L2, x2, reduce=False)
    assert jnp.allclose(out2_nr, ref2_nr, rtol=1e-5, atol=1e-5)

    print("KERNEL_OK")
</pallas_src>

<mosaic_0001>
module attributes {stable_mosaic.version = 11 : i64} {
  func.func @_gnll_reduce_kernel(%arg0: i32, %arg1: memref<12x2x128xf32, #tpu.memory_space<vmem>>, %arg2: memref<1x8x128xf32, #tpu.memory_space<vmem>>) attributes {dimension_semantics = [#tpu.dimension_semantics<parallel>], iteration_bounds = array<i64: 1>, scalar_prefetch = 0 : i64, scratch_operands = 0 : i64, tpu.core_type = #tpu.core_type<tc>, window_params = [{transform_indices = @transform_0, window_bounds = array<i64: 12, 2, 128>}, {transform_indices = @transform_1, window_bounds = array<i64: 1, 8, 128>}]} {
    %c0 = arith.constant 0 : index
    %c0_0 = arith.constant 0 : index
    %c0_1 = arith.constant 0 : index
    %0 = vector.load %arg1[%c0, %c0_0, %c0_1] : memref<12x2x128xf32, #tpu.memory_space<vmem>>, vector<1x2x128xf32>
    %1 = vector.shape_cast %0 : vector<1x2x128xf32> to vector<2x128xf32>
    %c1 = arith.constant 1 : index
    %c0_2 = arith.constant 0 : index
    %c0_3 = arith.constant 0 : index
    %2 = vector.load %arg1[%c1, %c0_2, %c0_3] : memref<12x2x128xf32, #tpu.memory_space<vmem>>, vector<1x2x128xf32>
    %3 = vector.shape_cast %2 : vector<1x2x128xf32> to vector<2x128xf32>
    %c2 = arith.constant 2 : index
    %c0_4 = arith.constant 0 : index
    %c0_5 = arith.constant 0 : index
    %4 = vector.load %arg1[%c2, %c0_4, %c0_5] : memref<12x2x128xf32, #tpu.memory_space<vmem>>, vector<1x2x128xf32>
    %5 = vector.shape_cast %4 : vector<1x2x128xf32> to vector<2x128xf32>
    %c3 = arith.constant 3 : index
    %c0_6 = arith.constant 0 : index
    %c0_7 = arith.constant 0 : index
    %6 = vector.load %arg1[%c3, %c0_6, %c0_7] : memref<12x2x128xf32, #tpu.memory_space<vmem>>, vector<1x2x128xf32>
    %7 = vector.shape_cast %6 : vector<1x2x128xf32> to vector<2x128xf32>
    %c4 = arith.constant 4 : index
    %c0_8 = arith.constant 0 : index
    %c0_9 = arith.constant 0 : index
    %8 = vector.load %arg1[%c4, %c0_8, %c0_9] : memref<12x2x128xf32, #tpu.memory_space<vmem>>, vector<1x2x128xf32>
    %9 = vector.shape_cast %8 : vector<1x2x128xf32> to vector<2x128xf32>
    %c5 = arith.constant 5 : index
    %c0_10 = arith.constant 0 : index
    %c0_11 = arith.constant 0 : index
    %10 = vector.load %arg1[%c5, %c0_10, %c0_11] : memref<12x2x128xf32, #tpu.memory_space<vmem>>, vector<1x2x128xf32>
    %11 = vector.shape_cast %10 : vector<1x2x128xf32> to vector<2x128xf32>
    %c6 = arith.constant 6 : index
    %c0_12 = arith.constant 0 : index
    %c0_13 = arith.constant 0 : index
    %12 = vector.load %arg1[%c6, %c0_12, %c0_13] : memref<12x2x128xf32, #tpu.memory_space<vmem>>, vector<1x2x128xf32>
    %13 = vector.shape_cast %12 : vector<1x2x128xf32> to vector<2x128xf32>
    %c7 = arith.constant 7 : index
    %c0_14 = arith.constant 0 : index
    %c0_15 = arith.constant 0 : index
    %14 = vector.load %arg1[%c7, %c0_14, %c0_15] : memref<12x2x128xf32, #tpu.memory_space<vmem>>, vector<1x2x128xf32>
    %15 = vector.shape_cast %14 : vector<1x2x128xf32> to vector<2x128xf32>
    %c8 = arith.constant 8 : index
    %c0_16 = arith.constant 0 : index
    %c0_17 = arith.constant 0 : index
    %16 = vector.load %arg1[%c8, %c0_16, %c0_17] : memref<12x2x128xf32, #tpu.memory_space<vmem>>, vector<1x2x128xf32>
    %17 = vector.shape_cast %16 : vector<1x2x128xf32> to vector<2x128xf32>
    %c9 = arith.constant 9 : index
    %c0_18 = arith.constant 0 : index
    %c0_19 = arith.constant 0 : index
    %18 = vector.load %arg1[%c9, %c0_18, %c0_19] : memref<12x2x128xf32, #tpu.memory_space<vmem>>, vector<1x2x128xf32>
    %19 = vector.shape_cast %18 : vector<1x2x128xf32> to vector<2x128xf32>
    %c10 = arith.constant 10 : index
    %c0_20 = arith.constant 0 : index
    %c0_21 = arith.constant 0 : index
    %20 = vector.load %arg1[%c10, %c0_20, %c0_21] : memref<12x2x128xf32, #tpu.memory_space<vmem>>, vector<1x2x128xf32>
    %21 = vector.shape_cast %20 : vector<1x2x128xf32> to vector<2x128xf32>
    %c11 = arith.constant 11 : index
    %c0_22 = arith.constant 0 : index
    %c0_23 = arith.constant 0 : index
    %22 = vector.load %arg1[%c11, %c0_22, %c0_23] : memref<12x2x128xf32, #tpu.memory_space<vmem>>, vector<1x2x128xf32>
    %23 = vector.shape_cast %22 : vector<1x2x128xf32> to vector<2x128xf32>
    %24 = arith.subf %7, %1 : vector<2x128xf32>
    %25 = arith.subf %9, %3 : vector<2x128xf32>
    %26 = arith.subf %11, %5 : vector<2x128xf32>
    %27 = tpu.reciprocal %13 {approx = true} : vector<2x128xf32> -> vector<2x128xf32>
    %28 = arith.mulf %13, %27 : vector<2x128xf32>
    %cst = arith.constant 2.000000e+00 : f32
    %29 = vector.broadcast %cst : f32 to vector<2x128xf32>
    %30 = arith.subf %29, %28 : vector<2x128xf32>
    %31 = arith.mulf %27, %30 : vector<2x128xf32>
    %32 = arith.mulf %13, %31 : vector<2x128xf32>
    %cst_24 = arith.constant 2.000000e+00 : f32
    %33 = vector.broadcast %cst_24 : f32 to vector<2x128xf32>
    %34 = arith.subf %33, %32 : vector<2x128xf32>
    %35 = arith.mulf %31, %34 : vector<2x128xf32>
    %36 = tpu.reciprocal %17 {approx = true} : vector<2x128xf32> -> vector<2x128xf32>
    %37 = arith.mulf %17, %36 : vector<2x128xf32>
    %cst_25 = arith.constant 2.000000e+00 : f32
    %38 = vector.broadcast %cst_25 : f32 to vector<2x128xf32>
    %39 = arith.subf %38, %37 : vector<2x128xf32>
    %40 = arith.mulf %36, %39 : vector<2x128xf32>
    %41 = arith.mulf %17, %40 : vector<2x128xf32>
    %cst_26 = arith.constant 2.000000e+00 : f32
    %42 = vector.broadcast %cst_26 : f32 to vector<2x128xf32>
    %43 = arith.subf %42, %41 : vector<2x128xf32>
    %44 = arith.mulf %40, %43 : vector<2x128xf32>
    %45 = tpu.reciprocal %23 {approx = true} : vector<2x128xf32> -> vector<2x128xf32>
    %46 = arith.mulf %23, %45 : vector<2x128xf32>
    %cst_27 = arith.constant 2.000000e+00 : f32
    %47 = vector.broadcast %cst_27 : f32 to vector<2x128xf32>
    %48 = arith.subf %47, %46 : vector<2x128xf32>
    %49 = arith.mulf %45, %48 : vector<2x128xf32>
    %50 = arith.mulf %23, %49 : vector<2x128xf32>
    %cst_28 = arith.constant 2.000000e+00 : f32
    %51 = vector.broadcast %cst_28 : f32 to vector<2x128xf32>
    %52 = arith.subf %51, %50 : vector<2x128xf32>
    %53 = arith.mulf %49, %52 : vector<2x128xf32>
    %54 = arith.mulf %24, %35 : vector<2x128xf32>
    %55 = arith.mulf %15, %54 : vector<2x128xf32>
    %56 = arith.subf %25, %55 : vector<2x128xf32>
    %57 = arith.mulf %56, %44 : vector<2x128xf32>
    %58 = arith.mulf %19, %54 : vector<2x128xf32>
    %59 = arith.subf %26, %58 : vector<2x128xf32>
    %60 = arith.mulf %21, %57 : vector<2x128xf32>
    %61 = arith.subf %59, %60 : vector<2x128xf32>
    %62 = arith.mulf %61, %53 : vector<2x128xf32>
    %63 = arith.mulf %54, %54 : vector<2x128xf32>
    %64 = arith.mulf %57, %57 : vector<2x128xf32>
    %65 = arith.addf %63, %64 : vector<2x128xf32>
    %66 = arith.mulf %62, %62 : vector<2x128xf32>
    %67 = arith.addf %65, %66 : vector<2x128xf32>
    %68 = math.log %13 : vector<2x128xf32>
    %69 = math.log %17 : vector<2x128xf32>
    %70 = arith.addf %68, %69 : vector<2x128xf32>
    %71 = math.log %23 : vector<2x128xf32>
    %72 = arith.addf %70, %71 : vector<2x128xf32>
    %cst_29 = arith.constant 2.000000e+00 : f32
    %73 = vector.broadcast %cst_29 : f32 to vector<2x128xf32>
    %74 = arith.mulf %73, %72 : vector<2x128xf32>
    %75 = arith.addf %67, %74 : vector<2x128xf32>
    %cst_30 = arith.constant 5.51363134 : f32
    %76 = vector.broadcast %cst_30 : f32 to vector<2x128xf32>
    %77 = arith.addf %75, %76 : vector<2x128xf32>
    %cst_31 = arith.constant 5.000000e-01 : f32
    %78 = vector.broadcast %cst_31 : f32 to vector<2x128xf32>
    %79 = arith.mulf %78, %77 : vector<2x128xf32>
    %c0_i32 = arith.constant 0 : i32
    %80 = arith.cmpi slt, %arg0, %c0_i32 : i32
    %81 = arith.extui %80 : i1 to i32
    %c0_i32_32 = arith.constant 0 : i32
    %82 = arith.cmpi ne, %81, %c0_i32_32 : i32
    scf.if %82 {
      %cst_35 = arith.constant dense<0.000000e+00> : vector<128xf32>
      %86 = vector.multi_reduction <add>, %79, %cst_35 [0] : vector<2x128xf32> to vector<128xf32>
      %87 = vector.shape_cast %86 : vector<128xf32> to vector<1x128xf32>
      %88 = tpu.iota {dimensions = array<i32: 0>} : vector<8x128xi32>
      %c0_i32_36 = arith.constant 0 : i32
      %89 = vector.broadcast %c0_i32_36 : i32 to vector<8x128xi32>
      %90 = arith.cmpi eq, %88, %89 : vector<8x128xi32>
      %cst_37 = arith.constant 0.000000e+00 : f32
      %91 = vector.shape_cast %87 : vector<1x128xf32> to vector<1x128xf32>
      %92 = vector.broadcast %91 : vector<1x128xf32> to vector<8x128xf32>
      %93 = vector.broadcast %cst_37 : f32 to vector<8x128xf32>
      %94 = arith.select %90, %92, %93 : vector<8x128xi1>, vector<8x128xf32>
      %c0_38 = arith.constant 0 : index
      %c0_39 = arith.constant 0 : index
      %c0_40 = arith.constant 0 : index
      %95 = vector.load %arg2[%c0_38, %c0_39, %c0_40] : memref<1x8x128xf32, #tpu.memory_space<vmem>>, vector<1x8x128xf32>
      %96 = vector.shape_cast %95 : vector<1x8x128xf32> to vector<8x128xf32>
      %97 = vector.shape_cast %94 : vector<8x128xf32> to vector<1x8x128xf32>
      tpu.vector_store %arg2[%c0_38, %c0_39, %c0_40], %97 {strides = array<i32>} : memref<1x8x128xf32, #tpu.memory_space<vmem>>, vector<1x8x128xf32>,
    } else {
    }
    %c0_i32_33 = arith.constant 0 : i32
    %83 = arith.cmpi eq, %arg0, %c0_i32_33 : i32
    %84 = arith.extui %83 : i1 to i32
    %c0_i32_34 = arith.constant 0 : i32
    %85 = arith.cmpi ne, %84, %c0_i32_34 : i32
    scf.if %85 {
      %86 = tpu.iota {dimensions = array<i32: 0>} : vector<2x128xi32>
      %87 = tpu.iota {dimensions = array<i32: 1>} : vector<2x128xi32>
      %c2_i32 = arith.constant 2 : i32
      %88 = arith.muli %arg0, %c2_i32 : i32
      %89 = vector.broadcast %88 : i32 to vector<2x128xi32>
      %90 = arith.addi %89, %86 : vector<2x128xi32>
      %c128_i32 = arith.constant 128 : i32
      %91 = vector.broadcast %c128_i32 : i32 to vector<2x128xi32>
      %92 = arith.muli %90, %91 : vector<2x128xi32>
      %93 = arith.addi %92, %87 : vector<2x128xi32>
      %c200_i32 = arith.constant 200 : i32
      %94 = vector.broadcast %c200_i32 : i32 to vector<2x128xi32>
      %95 = arith.cmpi slt, %93, %94 : vector<2x128xi32>
      %cst_35 = arith.constant 0.000000e+00 : f32
      %96 = vector.broadcast %cst_35 : f32 to vector<2x128xf32>
      %97 = arith.select %95, %79, %96 : vector<2x128xi1>, vector<2x128xf32>
      %cst_36 = arith.constant dense<0.000000e+00> : vector<128xf32>
      %98 = vector.multi_reduction <add>, %97, %cst_36 [0] : vector<2x128xf32> to vector<128xf32>
      %99 = vector.shape_cast %98 : vector<128xf32> to vector<1x128xf32>
      %100 = tpu.iota {dimensions = array<i32: 0>} : vector<8x128xi32>
      %c0_i32_37 = arith.constant 0 : i32
      %101 = vector.broadcast %c0_i32_37 : i32 to vector<8x128xi32>
      %102 = arith.cmpi eq, %100, %101 : vector<8x128xi32>
      %cst_38 = arith.constant 0.000000e+00 : f32
      %103 = vector.shape_cast %99 : vector<1x128xf32> to vector<1x128xf32>
      %104 = vector.broadcast %103 : vector<1x128xf32> to vector<8x128xf32>
      %105 = vector.broadcast %cst_38 : f32 to vector<8x128xf32>
      %106 = arith.select %102, %104, %105 : vector<8x128xi1>, vector<8x128xf32>
      %c0_39 = arith.constant 0 : index
      %c0_40 = arith.constant 0 : index
      %c0_41 = arith.constant 0 : index
      %107 = vector.load %arg2[%c0_39, %c0_40, %c0_41] : memref<1x8x128xf32, #tpu.memory_space<vmem>>, vector<1x8x128xf32>
      %108 = vector.shape_cast %107 : vector<1x8x128xf32> to vector<8x128xf32>
      %109 = vector.shape_cast %106 : vector<8x128xf32> to vector<1x8x128xf32>
      tpu.vector_store %arg2[%c0_39, %c0_40, %c0_41], %109 {strides = array<i32>} : memref<1x8x128xf32, #tpu.memory_space<vmem>>, vector<1x8x128xf32>,
    } else {
    }
    return
  }
  func.func @transform_0(%arg0: i32) -> (i32, i32, i32) {
    %c0_i32 = arith.constant 0 : i32
    %c0_i32_0 = arith.constant 0 : i32
    %c0_i32_1 = arith.constant 0 : i32
    return %c0_i32, %arg0, %c0_i32_0 : i32, i32, i32
  }
  func.func @transform_1(%arg0: i32) -> (i32, i32, i32) {
    %c0_i32 = arith.constant 0 : i32
    %c0_i32_0 = arith.constant 0 : i32
    %c0_i32_1 = arith.constant 0 : i32
    return %arg0, %c0_i32, %c0_i32_0 : i32, i32, i32
  }
}

</mosaic_0001>

<llo_original>
// kernel: gaussian_nll_loss_3d.1
$region0: #{gaussian_nll_loss_3d.1}
  #allocation0 [shape = 'u32[]', space=smem, size = 0x4, offset = 0x4, fixed_abs, tag = 'smem constant byte address 0x4 - core index']
  #allocation1 [shape = 'u32[144,128]{1,0:T(1,128)}', space=vmem, size = 0x12000, scoped, tag = 'internal scratch']
  %s0 = inlined_call_operand.vmem [shape: f32[12,2,128], index: 0, kind: input, shape index: {}]
  %s1 = inlined_call_operand.vmem [shape: f32[1,8,128], index: 1, kind: output, shape index: {}]
  %s2 = sld [smem:[#allocation0]]
  $region22: #{gaussian_nll_loss_3d.1} parent=0
    _
  %s4 = ssub.s32 1, %s2
  %s5 = scalar_select 0, %s4, %s2
  // Predicated region
  $region2: #{gaussian_nll_loss_3d.1} parent=0 // pred_check
    _
  $region3: #{gaussian_nll_loss_3d.1} parent=0 // pred_check_branch
    %7 = sbr.rel (0) target = $region5
  $region4: #{gaussian_nll_loss_3d.1} parent=0 // pred_region
    _
  $region5: #{gaussian_nll_loss_3d.1} parent=0 // pred_fallthru
    _
  %v8 = vld [vmem:[%s0] sm:$0x3]
  %s9 = scalar_lea.vmem %s0, 2
  %v10 = vld [vmem:[%s9] sm:$0x3]
  %s11 = scalar_lea.vmem %s0, 4
  %v12 = vld [vmem:[%s11] sm:$0x3]
  %s13 = scalar_lea.vmem %s0, 6
  %v14 = vld [vmem:[%s13] sm:$0x3]
  %s15 = scalar_lea.vmem %s0, 8
  %v16 = vld [vmem:[%s15] sm:$0x3]
  %s17 = scalar_lea.vmem %s0, 10
  %v18 = vld [vmem:[%s17] sm:$0x3]
  %s19 = scalar_lea.vmem %s0, 12
  %v20 = vld [vmem:[%s19] sm:$0x3]
  %s21 = scalar_lea.vmem %s0, 14
  %v22 = vld [vmem:[%s21] sm:$0x3]
  %s23 = scalar_lea.vmem %s0, 16
  %v24 = vld [vmem:[%s23] sm:$0x3]
  %s25 = scalar_lea.vmem %s0, 18
  %v26 = vld [vmem:[%s25] sm:$0x3]
  %s27 = scalar_lea.vmem %s0, 20
  %v28 = vld [vmem:[%s27] sm:$0x3]
  %s29 = scalar_lea.vmem %s0, 22
  %v30 = vld [vmem:[%s29] sm:$0x3]
  %v31 = vsub.f32 %v14, %v8
  %v32 = vsub.f32 %v16, %v10
  %v33 = vsub.f32 %v18, %v12
  %v34 = vrcp.pop %v20
  %v35 = vmul.f32 %v20, %v34
  %v36 = vsub.f32 2.0, %v35
  %v37 = vmul.f32 %v34, %v36
  %v38 = vmul.f32 %v20, %v37
  %v39 = vsub.f32 2.0, %v38
  %v40 = vmul.f32 %v37, %v39
  %v41 = vrcp.pop %v24
  %v42 = vmul.f32 %v24, %v41
  %v43 = vsub.f32 2.0, %v42
  %v44 = vmul.f32 %v41, %v43
  %v45 = vmul.f32 %v24, %v44
  %v46 = vsub.f32 2.0, %v45
  %v47 = vmul.f32 %v44, %v46
  %v48 = vrcp.pop %v30
  %v49 = vmul.f32 %v30, %v48
  %v50 = vsub.f32 2.0, %v49
  %v51 = vmul.f32 %v48, %v50
  %v52 = vmul.f32 %v30, %v51
  %v53 = vsub.f32 2.0, %v52
  %v54 = vmul.f32 %v51, %v53
  %v55 = vmul.f32 %v31, %v40
  %v56 = vmul.f32 %v22, %v55
  %v57 = vsub.f32 %v32, %v56
  %v58 = vmul.f32 %v57, %v47
  %v59 = vmul.f32 %v26, %v55
  %v60 = vsub.f32 %v33, %v59
  %v61 = vmul.f32 %v28, %v58
  %v62 = vsub.f32 %v60, %v61
  %v63 = vmul.f32 %v62, %v54
  %v64 = vmul.f32 %v55, %v55
  %v65 = vmul.f32 %v58, %v58
  %v66 = vadd.f32 %v64, %v65
  %v67 = vmul.f32 %v63, %v63
  %v68 = vadd.f32 %v66, %v67
  %v69 = vlog2.pop %v20
  %v70 = vmul.f32 %v69, 0.6931472
  %v71 = vlog2.pop %v24
  %v72 = vmul.f32 %v71, 0.6931472
  %v73 = vadd.f32 %v70, %v72
  %v74 = vlog2.pop %v30
  %v75 = vmul.f32 %v74, 0.6931472
  %v76 = vadd.f32 %v73, %v75
  %v77 = vmul.f32 %v76, 2.0
  %v78 = vadd.f32 %v68, %v77
  %v79 = vadd.f32 %v78, 5.5136313
  %v80 = vmul.f32 %v79, 0.5
  %p81 = scmp.lt.s32.totalorder 0, 0
  // Predicated region
  $region6: #{gaussian_nll_loss_3d.1} parent=0 // pred_check
    %p82 = pneg %p81
  $region7: #{gaussian_nll_loss_3d.1} parent=0 // pred_check_branch
    %84 = sbr.rel (%p82) target = $region9
  $region8: #{gaussian_nll_loss_3d.1} parent=0 // pred_region
    %vm85 = vcmask 1041408
    %v86 = vsel %vm85, %v80, 0.0
    %v87 = vrot.slane %v86, 4
    %v88 = vadd.f32 %v86, %v87
    %v89 = vrot.slane %v88, 2
    %v90 = vadd.f32 %v88, %v89
    %v91 = vrot.slane %v90, 1
    %v92 = vadd.f32 %v90, %v91
    %v93 = vlaneseq
    %v94 = vshrl.u32 %v93, 7
    %vm95 = vcmp.eq.s32.totalorder %v94, 0
    %v96 = vsel %vm95, %v92, 0.0
    %97 = vst [vmem:[%s1] sm:$0xff] %v96
  $region9: #{gaussian_nll_loss_3d.1} parent=0 // pred_fallthru
    _
  %p98 = scmp.eq.s32.totalorder 0, 0
  // Predicated region
  $region10: #{gaussian_nll_loss_3d.1} parent=0 // pred_check
    %p99 = pneg %p98
  $region11: #{gaussian_nll_loss_3d.1} parent=0 // pred_check_branch
    %101 = sbr.rel (%p99) target = $region13
  $region12: #{gaussian_nll_loss_3d.1} parent=0 // pred_region
    %v102 = vlaneseq
    %v103 = vshrl.u32 %v102, 7
    %v104 = vlaneseq
    %v105 = vand.u32 %v104, 127
    %s106 = smul.u32 0, 2
    %v107 = vstv %s106
    %v108 = vadd.s32 %v107, %v103
    %v109 = vmul.u32 %v108, 128
    %v110 = vadd.s32 %v109, %v105
    %vm111 = vcmp.lt.s32.totalorder %v110, 200
    %v112 = vsel %vm111, %v80, 0.0
    %vm113 = vcmask 1041408
    %v114 = vsel %vm113, %v112, 0.0
    %v115 = vrot.slane %v114, 4
    %v116 = vadd.f32 %v114, %v115
    %v117 = vrot.slane %v116, 2
    %v118 = vadd.f32 %v116, %v117
    %v119 = vrot.slane %v118, 1
    %v120 = vadd.f32 %v118, %v119
    %vm121 = vcmp.eq.s32.totalorder %v103, 0
    %v122 = vsel %vm121, %v120, 0.0
    %123 = vst [vmem:[%s1] sm:$0xff] %v122
  $region13: #{gaussian_nll_loss_3d.1} parent=0 // pred_fallthru
    _
  // Predicated region
  $region14: #{gaussian_nll_loss_3d.1} parent=0 // pred_check
    _
  $region15: #{gaussian_nll_loss_3d.1} parent=0 // pred_check_branch
    %125 = sbr.rel (0) target = $region17
  $region16: #{gaussian_nll_loss_3d.1} parent=0 // pred_region
    _
  $region17: #{gaussian_nll_loss_3d.1} parent=0 // pred_fallthru
    _
  // Predicated region
  $region18: #{gaussian_nll_loss_3d.1} parent=0 // pred_check
    _
  $region19: #{gaussian_nll_loss_3d.1} parent=0 // pred_check_branch
    %127 = sbr.rel (0) target = $region21
  $region20: #{gaussian_nll_loss_3d.1} parent=0 // pred_region
    _
  $region21: #{gaussian_nll_loss_3d.1} parent=0 // pred_fallthru
    _

</llo_original>
